<compile_context>
chip_gen: v5e
topology: v5e:2x2
jax: 0.10.0
libtpu: 0.0.40
codegen_flags: <defaults>
</compile_context>

<pallas_src>
import functools

import jax
import jax.numpy as jnp
from jax.experimental import pallas as pl
from jax.experimental.pallas import tpu as pltpu


def _round_up(x, m):
    return ((x + m - 1) // m) * m


def _loss_kernel(ym_ref, ymoe_ref, yt_ref, w_ref, out_ref,
                 m_acc, moe_acc, eq_acc, *, inv_e):
    """Accumulate raw partial sums for one batch split.

    grid = (num_splits, steps); axis 0 "parallel" (2-TC split on v7x),
    axis 1 "arbitrary" (reduction).  Output lanes (per split, written once):
      lane 0: sum of CE(y_pred_model) over the split's (padded) rows
      lane 1: sum of CE(y_pred_moe)  over the split's (padded) rows
      lane 2: sum of (w - 1/E)^2     over the split's (padded) weight elems
    Padding corrections are applied in the wrapper.
    """
    step = pl.program_id(1)

    @pl.when(step == 0)
    def _init():
        m_acc[...] = jnp.zeros_like(m_acc)
        moe_acc[...] = jnp.zeros_like(moe_acc)
        eq_acc[...] = jnp.zeros_like(eq_acc)

    # In-kernel casts: storage dtype (e.g. bf16) in HBM/VMEM, math in f32.
    ym = ym_ref[...].astype(jnp.float32)          # (tile_n, C)
    ymoe = ymoe_ref[...].astype(jnp.float32)      # (tile_n, C)
    yt = yt_ref[...]                              # (tile_n, 1) int32
    w = w_ref[...].astype(jnp.float32)            # (tile_w, 128) lane-dense

    # Target-class mask (no materialized f32 one-hot).
    cls_iota = jax.lax.broadcasted_iota(jnp.int32, ym.shape, 1)
    tgt_mask = cls_iota == yt                     # (tile_n, C)

    def ce_partial_sum(logits):
        # per-row CE = logsumexp(x) - x[target].  Padded rows (all-zero
        # logits, target 0) contribute exactly log(C); corrected in wrapper.
        m = jnp.max(logits, axis=-1, keepdims=True)
        lse = jnp.log(jnp.sum(jnp.exp(logits - m), axis=-1, keepdims=True)) + m
        tgt = jnp.sum(jnp.where(tgt_mask, logits, 0.0), axis=-1, keepdims=True)
        return jnp.sum(lse - tgt, axis=0, keepdims=True)       # (1, 1)

    m_acc[...] += ce_partial_sum(ym)
    moe_acc[...] += ce_partial_sum(ymoe)

    # Lane-dense MSE over flattened weights.  No mask: padded elements hold
    # ~1/E and their constant contribution is subtracted in the wrapper.
    diff = w - inv_e
    eq_acc[...] += jnp.sum(jnp.sum(diff * diff, axis=-1, keepdims=True),
                           axis=0, keepdims=True)               # (1, 1)

    @pl.when(step == pl.num_programs(1) - 1)
    def _finalize():
        # Single lane-dense, tile-aligned (8,128) store per split.
        lane = jax.lax.broadcasted_iota(jnp.int32, out_ref.shape, 1)
        out_ref[...] = (jnp.where(lane == 0, m_acc[...], 0.0)
                        + jnp.where(lane == 1, moe_acc[...], 0.0)
                        + jnp.where(lane == 2, eq_acc[...], 0.0))


def my_loss(y_pred_model, y_pred_moe, y_true, weights,
            alpha=0.5, beta=0.5, tile_n=None, num_splits=2):
    """Pallas implementation of MyLoss.forward (weights always provided).

    Returns (total_loss, model_loss, moe_loss, equal_loss) as f32 scalars.
    """
    n, c = y_pred_model.shape
    e = weights.shape[1]
    logits_itemsize = jnp.dtype(y_pred_model.dtype).itemsize
    w_itemsize = jnp.dtype(weights.dtype).itemsize

    # Sub-32-bit dtypes pack along sublanes; keep tile_n a multiple of 32
    # for them (8 suffices for 32-bit) to avoid compiler relayouts.
    row_mult = 8 if min(logits_itemsize, w_itemsize) >= 4 else 32

    # --- bytes-based tile sizing against a VMEM *footprint* budget ---------
    # Per batch row, double-buffered pipeline footprint (lane-padded blocks):
    #   2 logits inputs : 2 bufs * round_up(C,128) * itemsize
    #   targets (n,1)   : 2 bufs * 128 lanes * 4 B   (lane padding dominates)
    #   weights (flat)  : ~2 bufs * E * w_itemsize per batch row
    c_pad = _round_up(c, 128)
    per_row_bytes = (2 * 2 * c_pad * logits_itemsize
                     + 2 * 128 * 4
                     + 2 * e * w_itemsize)
    if tile_n is None:
        budget = 24 * 1024 * 1024          # working-set target, all chips
        fixed = 512 * 1024                 # out blocks + scratch + margin
        tile_n = (budget - fixed) // per_row_bytes

    per_split = -(-n // num_splits)
    tile_n = int(min(int(tile_n), _round_up(per_split, row_mult)))
    tile_n = max(row_mult, (tile_n // row_mult) * row_mult)

    steps = -(-n // (num_splits * tile_n))        # inner reduction steps
    n_pad = num_splits * steps * tile_n
    total_steps = num_splits * steps

    # --- pad batch-dim inputs (padded rows corrected analytically) ---------
    if n_pad != n:
        pad = n_pad - n
        y_pred_model = jnp.pad(y_pred_model, ((0, pad), (0, 0)))
        y_pred_moe = jnp.pad(y_pred_moe, ((0, pad), (0, 0)))
        y_true = jnp.pad(y_true, ((0, pad),))
    yt2d = y_true.astype(jnp.int32).reshape(n_pad, 1)

    # --- lane-dense flattened weights, padded with dtype(1/E) --------------
    inv_e = 1.0 / e
    pad_val = float(jnp.asarray(inv_e, dtype=weights.dtype))   # dtype-rounded
    total_w = n * e
    rows_needed = -(-total_w // 128)
    tile_w = _round_up(max(1, -(-rows_needed // total_steps)), 8)
    rows_pad = tile_w * total_steps
    w2d = jnp.pad(weights.reshape(-1), (0, rows_pad * 128 - total_w),
                  constant_values=pad_val).reshape(rows_pad, 128)

    # --- VMEM working set / explicit scoped limit ---------------------------
    working_set = (4 * tile_n * c_pad * logits_itemsize   # 2 logits x 2 bufs
                   + 2 * tile_n * 128 * 4                 # targets, padded
                   + 2 * tile_w * 128 * w_itemsize        # weights
                   + 2 * 8 * 128 * 4                      # out block
                   + 3 * 4096)                            # scratch (padded)
    vmem_limit = int(min(48 * 1024 * 1024,
                         max(32 * 1024 * 1024, working_set + 8 * 1024 * 1024)))

    kernel = functools.partial(_loss_kernel, inv_e=inv_e)

    out = pl.pallas_call(
        kernel,
        out_shape=jax.ShapeDtypeStruct((num_splits * 8, 128), jnp.float32),
        grid=(num_splits, steps),
        in_specs=[
            pl.BlockSpec((tile_n, c), lambda s, i: (s * steps + i, 0)),
            pl.BlockSpec((tile_n, c), lambda s, i: (s * steps + i, 0)),
            pl.BlockSpec((tile_n, 1), lambda s, i: (s * steps + i, 0)),
            pl.BlockSpec((tile_w, 128), lambda s, i: (s * steps + i, 0)),
        ],
        out_specs=pl.BlockSpec((8, 128), lambda s, i: (s, 0)),
        scratch_shapes=[pltpu.VMEM((1, 1), jnp.float32)] * 3,
        compiler_params=pltpu.CompilerParams(
            dimension_semantics=("parallel", "arbitrary"),
            vmem_limit_bytes=vmem_limit),
    )(y_pred_model, y_pred_moe, yt2d, w2d)

    # --- combine per-split partials + analytic padding corrections ---------
    sums = out.reshape(num_splits, 8, 128)[:, 0, :]
    ce_model_sum = jnp.sum(sums[:, 0])
    ce_moe_sum = jnp.sum(sums[:, 1])
    sq_sum = jnp.sum(sums[:, 2])

    pad_rows = jnp.float32(n_pad - n)
    log_c = jnp.log(jnp.float32(c))
    model_loss = (ce_model_sum - pad_rows * log_c) / jnp.float32(n)
    moe_loss = (ce_moe_sum - pad_rows * log_c) / jnp.float32(n)

    d_pad = jnp.float32(pad_val) - jnp.float32(inv_e)     # 0 when 1/E exact
    pad_w_elems = jnp.float32(rows_pad * 128 - total_w)
    equal_loss = (sq_sum - pad_w_elems * d_pad * d_pad) / jnp.float32(total_w)

    total = (alpha * model_loss + (1.0 - alpha) * moe_loss + beta * equal_loss)
    return total, model_loss, moe_loss, equal_loss


def _reference(y_pred_model, y_pred_moe, y_true, weights, alpha=0.5, beta=0.5):
    def ce(logits, labels):
        logp = jax.nn.log_softmax(logits, axis=-1)
        nll = -jnp.take_along_axis(logp, labels[:, None], axis=-1)[:, 0]
        return jnp.mean(nll)

    model_loss = ce(y_pred_model, y_true)
    moe_loss = ce(y_pred_moe, y_true)
    equal = jnp.full_like(weights, 1.0 / weights.shape[1])
    equal_loss = jnp.mean((weights - equal) ** 2)
    total = alpha * model_loss + (1 - alpha) * moe_loss + beta * equal_loss
    return total, model_loss, moe_loss, equal_loss


if __name__ == "__main__":
    key = jax.random.PRNGKey(0)

    def run_case(n, c, e, dtype, tile_n=None):
        k1, k2, k3, k4 = jax.random.split(jax.random.fold_in(key, n * 131 + c), 4)
        ypm = jax.random.normal(k1, (n, c), dtype=jnp.float32).astype(dtype)
        ypmoe = jax.random.normal(k2, (n, c), dtype=jnp.float32).astype(dtype)
        yt = jax.random.randint(k3, (n,), 0, c, dtype=jnp.int32)
        w = jax.nn.softmax(
            jax.random.normal(k4, (n, e), dtype=jnp.float32), axis=-1).astype(dtype)

        out = my_loss(ypm, ypmoe, yt, w, alpha=0.5, beta=0.5, tile_n=tile_n)
        out = jax.block_until_ready(out)

        ref = _reference(ypm.astype(jnp.float32), ypmoe.astype(jnp.float32),
                         yt, w.astype(jnp.float32), alpha=0.5, beta=0.5)
        for got, want in zip(out, ref):
            assert jnp.allclose(got, want, rtol=1e-5, atol=1e-5), \
                (n, c, e, dtype, got, want)

    # tiny case (1 step per split), matches the module's usage
    run_case(8, 32, 4, jnp.float32)
    # ragged batch, default bytes-based tiling (tile_n clamps to the batch)
    run_case(100, 32, 4, jnp.float32)
    # ragged batch, forced small tile -> multi-step accumulation per split
    run_case(100, 32, 4, jnp.float32, tile_n=32)
    # bf16 inputs: in-kernel casts, 32-row tile multiple
    run_case(100, 32, 4, jnp.bfloat16, tile_n=32)

    print("KERNEL_OK")
</pallas_src>

<mosaic_0001>
module attributes {stable_mosaic.version = 11 : i64} {
  func.func @_loss_kernel(%arg0: i32, %arg1: i32, %arg2: memref<8x32xf32, #tpu.memory_space<vmem>>, %arg3: memref<8x32xf32, #tpu.memory_space<vmem>>, %arg4: memref<8x1xi32, #tpu.memory_space<vmem>>, %arg5: memref<8x128xf32, #tpu.memory_space<vmem>>, %arg6: memref<8x128xf32, #tpu.memory_space<vmem>>, %arg7: memref<1x1xf32, #tpu.memory_space<vmem>>, %arg8: memref<1x1xf32, #tpu.memory_space<vmem>>, %arg9: memref<1x1xf32, #tpu.memory_space<vmem>>) attributes {dimension_semantics = [#tpu.dimension_semantics<parallel>, #tpu.dimension_semantics<arbitrary>], iteration_bounds = array<i64: 2, 1>, scalar_prefetch = 0 : i64, scratch_operands = 3 : i64, tpu.core_type = #tpu.core_type<tc>, window_params = [{transform_indices = @transform_0, window_bounds = array<i64: 8, 32>}, {transform_indices = @transform_1, window_bounds = array<i64: 8, 32>}, {transform_indices = @transform_2, window_bounds = array<i64: 8, 1>}, {transform_indices = @transform_3, window_bounds = array<i64: 8, 128>}, {transform_indices = @transform_4, window_bounds = array<i64: 8, 128>}]} {
    %c0_i32 = arith.constant 0 : i32
    %0 = arith.cmpi eq, %arg1, %c0_i32 : i32
    %1 = arith.extui %0 : i1 to i32
    %c0_i32_0 = arith.constant 0 : i32
    %2 = arith.cmpi ne, %1, %c0_i32_0 : i32
    scf.if %2 {
      %cst_34 = arith.constant 0.000000e+00 : f32
      %61 = vector.broadcast %cst_34 : f32 to vector<1x1xf32>
      %c0_35 = arith.constant 0 : index
      %c0_36 = arith.constant 0 : index
      %62 = vector.load %arg7[%c0_35, %c0_36] : memref<1x1xf32, #tpu.memory_space<vmem>>, vector<1x1xf32>
      tpu.vector_store %arg7[%c0_35, %c0_36], %61 {strides = array<i32>} : memref<1x1xf32, #tpu.memory_space<vmem>>, vector<1x1xf32>,
      %cst_37 = arith.constant 0.000000e+00 : f32
      %63 = vector.broadcast %cst_37 : f32 to vector<1x1xf32>
      %c0_38 = arith.constant 0 : index
      %c0_39 = arith.constant 0 : index
      %64 = vector.load %arg8[%c0_38, %c0_39] : memref<1x1xf32, #tpu.memory_space<vmem>>, vector<1x1xf32>
      tpu.vector_store %arg8[%c0_38, %c0_39], %63 {strides = array<i32>} : memref<1x1xf32, #tpu.memory_space<vmem>>, vector<1x1xf32>,
      %cst_40 = arith.constant 0.000000e+00 : f32
      %65 = vector.broadcast %cst_40 : f32 to vector<1x1xf32>
      %c0_41 = arith.constant 0 : index
      %c0_42 = arith.constant 0 : index
      %66 = vector.load %arg9[%c0_41, %c0_42] : memref<1x1xf32, #tpu.memory_space<vmem>>, vector<1x1xf32>
      tpu.vector_store %arg9[%c0_41, %c0_42], %65 {strides = array<i32>} : memref<1x1xf32, #tpu.memory_space<vmem>>, vector<1x1xf32>,
    } else {
    }
    %c0 = arith.constant 0 : index
    %c0_1 = arith.constant 0 : index
    %3 = vector.load %arg2[%c0, %c0_1] : memref<8x32xf32, #tpu.memory_space<vmem>>, vector<8x32xf32>
    %c0_2 = arith.constant 0 : index
    %c0_3 = arith.constant 0 : index
    %4 = vector.load %arg3[%c0_2, %c0_3] : memref<8x32xf32, #tpu.memory_space<vmem>>, vector<8x32xf32>
    %c0_4 = arith.constant 0 : index
    %c0_5 = arith.constant 0 : index
    %5 = vector.load %arg4[%c0_4, %c0_5] : memref<8x1xi32, #tpu.memory_space<vmem>>, vector<8x1xi32>
    %c0_6 = arith.constant 0 : index
    %c0_7 = arith.constant 0 : index
    %6 = vector.load %arg5[%c0_6, %c0_7] : memref<8x128xf32, #tpu.memory_space<vmem>>, vector<8x128xf32>
    %7 = tpu.iota {dimensions = array<i32: 1>} : vector<8x32xi32>
    %8 = vector.broadcast %5 : vector<8x1xi32> to vector<8x32xi32>
    %9 = arith.cmpi eq, %7, %8 : vector<8x32xi32>
    %c0_8 = arith.constant 0 : index
    %c0_9 = arith.constant 0 : index
    %10 = vector.load %arg7[%c0_8, %c0_9] : memref<1x1xf32, #tpu.memory_space<vmem>>, vector<1x1xf32>
    %cst = arith.constant dense<0xFF800000> : vector<8xf32>
    %11 = vector.multi_reduction <maximumf>, %3, %cst [1] : vector<8x32xf32> to vector<8xf32>
    %12 = vector.shape_cast %11 : vector<8xf32> to vector<8x1xf32>
    %13 = vector.broadcast %12 : vector<8x1xf32> to vector<8x32xf32>
    %14 = arith.subf %3, %13 : vector<8x32xf32>
    %15 = math.exp %14 : vector<8x32xf32>
    %cst_10 = arith.constant dense<0.000000e+00> : vector<8xf32>
    %16 = vector.multi_reduction <add>, %15, %cst_10 [1] : vector<8x32xf32> to vector<8xf32>
    %17 = vector.shape_cast %16 : vector<8xf32> to vector<8x1xf32>
    %18 = math.log %17 : vector<8x1xf32>
    %19 = arith.addf %18, %12 : vector<8x1xf32>
    %cst_11 = arith.constant 0.000000e+00 : f32
    %20 = vector.broadcast %cst_11 : f32 to vector<8x32xf32>
    %21 = arith.select %9, %3, %20 : vector<8x32xi1>, vector<8x32xf32>
    %cst_12 = arith.constant dense<0.000000e+00> : vector<8xf32>
    %22 = vector.multi_reduction <add>, %21, %cst_12 [1] : vector<8x32xf32> to vector<8xf32>
    %23 = vector.shape_cast %22 : vector<8xf32> to vector<8x1xf32>
    %24 = arith.subf %19, %23 : vector<8x1xf32>
    %cst_13 = arith.constant dense<0.000000e+00> : vector<1xf32>
    %25 = vector.multi_reduction <add>, %24, %cst_13 [0] : vector<8x1xf32> to vector<1xf32>
    %26 = vector.shape_cast %25 : vector<1xf32> to vector<1x1xf32>
    %27 = arith.addf %10, %26 : vector<1x1xf32>
    %c0_14 = arith.constant 0 : index
    %c0_15 = arith.constant 0 : index
    %28 = vector.load %arg7[%c0_14, %c0_15] : memref<1x1xf32, #tpu.memory_space<vmem>>, vector<1x1xf32>
    tpu.vector_store %arg7[%c0_14, %c0_15], %27 {strides = array<i32>} : memref<1x1xf32, #tpu.memory_space<vmem>>, vector<1x1xf32>,
    %c0_16 = arith.constant 0 : index
    %c0_17 = arith.constant 0 : index
    %29 = vector.load %arg8[%c0_16, %c0_17] : memref<1x1xf32, #tpu.memory_space<vmem>>, vector<1x1xf32>
    %cst_18 = arith.constant dense<0xFF800000> : vector<8xf32>
    %30 = vector.multi_reduction <maximumf>, %4, %cst_18 [1] : vector<8x32xf32> to vector<8xf32>
    %31 = vector.shape_cast %30 : vector<8xf32> to vector<8x1xf32>
    %32 = vector.broadcast %31 : vector<8x1xf32> to vector<8x32xf32>
    %33 = arith.subf %4, %32 : vector<8x32xf32>
    %34 = math.exp %33 : vector<8x32xf32>
    %cst_19 = arith.constant dense<0.000000e+00> : vector<8xf32>
    %35 = vector.multi_reduction <add>, %34, %cst_19 [1] : vector<8x32xf32> to vector<8xf32>
    %36 = vector.shape_cast %35 : vector<8xf32> to vector<8x1xf32>
    %37 = math.log %36 : vector<8x1xf32>
    %38 = arith.addf %37, %31 : vector<8x1xf32>
    %cst_20 = arith.constant 0.000000e+00 : f32
    %39 = vector.broadcast %cst_20 : f32 to vector<8x32xf32>
    %40 = arith.select %9, %4, %39 : vector<8x32xi1>, vector<8x32xf32>
    %cst_21 = arith.constant dense<0.000000e+00> : vector<8xf32>
    %41 = vector.multi_reduction <add>, %40, %cst_21 [1] : vector<8x32xf32> to vector<8xf32>
    %42 = vector.shape_cast %41 : vector<8xf32> to vector<8x1xf32>
    %43 = arith.subf %38, %42 : vector<8x1xf32>
    %cst_22 = arith.constant dense<0.000000e+00> : vector<1xf32>
    %44 = vector.multi_reduction <add>, %43, %cst_22 [0] : vector<8x1xf32> to vector<1xf32>
    %45 = vector.shape_cast %44 : vector<1xf32> to vector<1x1xf32>
    %46 = arith.addf %29, %45 : vector<1x1xf32>
    %c0_23 = arith.constant 0 : index
    %c0_24 = arith.constant 0 : index
    %47 = vector.load %arg8[%c0_23, %c0_24] : memref<1x1xf32, #tpu.memory_space<vmem>>, vector<1x1xf32>
    tpu.vector_store %arg8[%c0_23, %c0_24], %46 {strides = array<i32>} : memref<1x1xf32, #tpu.memory_space<vmem>>, vector<1x1xf32>,
    %cst_25 = arith.constant 2.500000e-01 : f32
    %48 = vector.broadcast %cst_25 : f32 to vector<8x128xf32>
    %49 = arith.subf %6, %48 : vector<8x128xf32>
    %c0_26 = arith.constant 0 : index
    %c0_27 = arith.constant 0 : index
    %50 = vector.load %arg9[%c0_26, %c0_27] : memref<1x1xf32, #tpu.memory_space<vmem>>, vector<1x1xf32>
    %51 = arith.mulf %49, %49 : vector<8x128xf32>
    %cst_28 = arith.constant dense<0.000000e+00> : vector<8xf32>
    %52 = vector.multi_reduction <add>, %51, %cst_28 [1] : vector<8x128xf32> to vector<8xf32>
    %53 = vector.shape_cast %52 : vector<8xf32> to vector<8x1xf32>
    %cst_29 = arith.constant dense<0.000000e+00> : vector<1xf32>
    %54 = vector.multi_reduction <add>, %53, %cst_29 [0] : vector<8x1xf32> to vector<1xf32>
    %55 = vector.shape_cast %54 : vector<1xf32> to vector<1x1xf32>
    %56 = arith.addf %50, %55 : vector<1x1xf32>
    %c0_30 = arith.constant 0 : index
    %c0_31 = arith.constant 0 : index
    %57 = vector.load %arg9[%c0_30, %c0_31] : memref<1x1xf32, #tpu.memory_space<vmem>>, vector<1x1xf32>
    tpu.vector_store %arg9[%c0_30, %c0_31], %56 {strides = array<i32>} : memref<1x1xf32, #tpu.memory_space<vmem>>, vector<1x1xf32>,
    %c0_i32_32 = arith.constant 0 : i32
    %58 = arith.cmpi eq, %arg1, %c0_i32_32 : i32
    %59 = arith.extui %58 : i1 to i32
    %c0_i32_33 = arith.constant 0 : i32
    %60 = arith.cmpi ne, %59, %c0_i32_33 : i32
    scf.if %60 {
      %61 = tpu.iota {dimensions = array<i32: 1>} : vector<8x128xi32>
      %c0_i32_34 = arith.constant 0 : i32
      %62 = vector.broadcast %c0_i32_34 : i32 to vector<8x128xi32>
      %63 = arith.cmpi eq, %61, %62 : vector<8x128xi32>
      %c0_35 = arith.constant 0 : index
      %c0_36 = arith.constant 0 : index
      %64 = vector.load %arg7[%c0_35, %c0_36] : memref<1x1xf32, #tpu.memory_space<vmem>>, vector<1x1xf32>
      %cst_37 = arith.constant 0.000000e+00 : f32
      %65 = vector.shape_cast %64 : vector<1x1xf32> to vector<1x1xf32>
      %66 = vector.broadcast %65 : vector<1x1xf32> to vector<8x128xf32>
      %67 = vector.broadcast %cst_37 : f32 to vector<8x128xf32>
      %68 = arith.select %63, %66, %67 : vector<8x128xi1>, vector<8x128xf32>
      %c1_i32 = arith.constant 1 : i32
      %69 = vector.broadcast %c1_i32 : i32 to vector<8x128xi32>
      %70 = arith.cmpi eq, %61, %69 : vector<8x128xi32>
      %c0_38 = arith.constant 0 : index
      %c0_39 = arith.constant 0 : index
      %71 = vector.load %arg8[%c0_38, %c0_39] : memref<1x1xf32, #tpu.memory_space<vmem>>, vector<1x1xf32>
      %cst_40 = arith.constant 0.000000e+00 : f32
      %72 = vector.shape_cast %71 : vector<1x1xf32> to vector<1x1xf32>
      %73 = vector.broadcast %72 : vector<1x1xf32> to vector<8x128xf32>
      %74 = vector.broadcast %cst_40 : f32 to vector<8x128xf32>
      %75 = arith.select %70, %73, %74 : vector<8x128xi1>, vector<8x128xf32>
      %76 = arith.addf %68, %75 : vector<8x128xf32>
      %c2_i32 = arith.constant 2 : i32
      %77 = vector.broadcast %c2_i32 : i32 to vector<8x128xi32>
      %78 = arith.cmpi eq, %61, %77 : vector<8x128xi32>
      %c0_41 = arith.constant 0 : index
      %c0_42 = arith.constant 0 : index
      %79 = vector.load %arg9[%c0_41, %c0_42] : memref<1x1xf32, #tpu.memory_space<vmem>>, vector<1x1xf32>
      %cst_43 = arith.constant 0.000000e+00 : f32
      %80 = vector.shape_cast %79 : vector<1x1xf32> to vector<1x1xf32>
      %81 = vector.broadcast %80 : vector<1x1xf32> to vector<8x128xf32>
      %82 = vector.broadcast %cst_43 : f32 to vector<8x128xf32>
      %83 = arith.select %78, %81, %82 : vector<8x128xi1>, vector<8x128xf32>
      %84 = arith.addf %76, %83 : vector<8x128xf32>
      %c0_44 = arith.constant 0 : index
      %c0_45 = arith.constant 0 : index
      %85 = vector.load %arg6[%c0_44, %c0_45] : memref<8x128xf32, #tpu.memory_space<vmem>>, vector<8x128xf32>
      tpu.vector_store %arg6[%c0_44, %c0_45], %84 {strides = array<i32>} : memref<8x128xf32, #tpu.memory_space<vmem>>, vector<8x128xf32>,
    } else {
    }
    return
  }
  func.func @transform_0(%arg0: i32, %arg1: i32) -> (i32, i32) {
    %c1_i32 = arith.constant 1 : i32
    %0 = arith.muli %arg0, %c1_i32 : i32
    %1 = arith.addi %0, %arg1 : i32
    %c0_i32 = arith.constant 0 : i32
    %c0_i32_0 = arith.constant 0 : i32
    return %1, %c0_i32 : i32, i32
  }
  func.func @transform_1(%arg0: i32, %arg1: i32) -> (i32, i32) {
    %c1_i32 = arith.constant 1 : i32
    %0 = arith.muli %arg0, %c1_i32 : i32
    %1 = arith.addi %0, %arg1 : i32
    %c0_i32 = arith.constant 0 : i32
    %c0_i32_0 = arith.constant 0 : i32
    return %1, %c0_i32 : i32, i32
  }
  func.func @transform_2(%arg0: i32, %arg1: i32) -> (i32, i32) {
    %c1_i32 = arith.constant 1 : i32
    %0 = arith.muli %arg0, %c1_i32 : i32
    %1 = arith.addi %0, %arg1 : i32
    %c0_i32 = arith.constant 0 : i32
    %c0_i32_0 = arith.constant 0 : i32
    return %1, %c0_i32 : i32, i32
  }
  func.func @transform_3(%arg0: i32, %arg1: i32) -> (i32, i32) {
    %c1_i32 = arith.constant 1 : i32
    %0 = arith.muli %arg0, %c1_i32 : i32
    %1 = arith.addi %0, %arg1 : i32
    %c0_i32 = arith.constant 0 : i32
    %c0_i32_0 = arith.constant 0 : i32
    return %1, %c0_i32 : i32, i32
  }
  func.func @transform_4(%arg0: i32, %arg1: i32) -> (i32, i32) {
    %c0_i32 = arith.constant 0 : i32
    %c0_i32_0 = arith.constant 0 : i32
    return %arg0, %c0_i32 : i32, i32
  }
}

</mosaic_0001>

<llo_original>
// kernel: tpu_custom_call.1
$region0: #{tpu_custom_call.1}
  #allocation0 [shape = 'u32[]', space=smem, size = 0x4, offset = 0x4, fixed_abs, tag = 'smem constant byte address 0x4 - core index']
  #allocation1 [shape = 'u32[72,128]{1,0:T(1,128)}', space=vmem, size = 0x9000, scoped, tag = 'internal scratch']
  #allocation2 [shape = 'f32[1,1]{1,0:T(1,128)}', space=vmem, size = 0x200, scoped, tag = 'scratch operand']
  #allocation3 [shape = 'f32[1,1]{1,0:T(1,128)}', space=vmem, size = 0x200, scoped, tag = 'scratch operand']
  #allocation4 [shape = 'f32[1,1]{1,0:T(1,128)}', space=vmem, size = 0x200, scoped, tag = 'scratch operand']
  %s0 = inlined_call_operand.vmem [shape: f32[16,32], index: 0, kind: input, shape index: {}]
  %s1 = inlined_call_operand.hbm [shape: f32[16,32], index: 1, kind: input, shape index: {}]
  %s2 = inlined_call_operand.vmem [shape: s32[16,1], index: 2, kind: input, shape index: {}]
  %s3 = inlined_call_operand.hbm [shape: f32[16,128], index: 3, kind: input, shape index: {}]
  %s4 = inlined_call_operand.hbm [shape: f32[16,128], index: 4, kind: output, shape index: {}]
  %s5 = sld [smem:[#allocation0]]
  $region65: #{tpu_custom_call.1} parent=0
    _
  %s7 = ssub.s32 1, %s5
  %s8 = scalar_select 0, %s7, %s5
  $region1: #{tpu_custom_call.1} parent=0
    #allocation5 [shape = 'u8[8192]{0}', space=vmem, size = 0x2000, scoped, tag = 'input window, operand 1']
    #allocation6 [shape = 's32[2]{0}', space=sflag, size = 0x8, scoped, tag = 'scoped memory for tpu_custom_call.1']
    #allocation7 [shape = 's32[2]{0}', space=sflag, size = 0x8, scoped, tag = 'scoped memory for tpu_custom_call.1']
    #allocation8 [shape = 'u8[8192]{0}', space=vmem, size = 0x2000, scoped, tag = 'input window, operand 3']
    #allocation9 [shape = 's32[2]{0}', space=sflag, size = 0x8, scoped, tag = 'scoped memory for tpu_custom_call.1']
    #allocation10 [shape = 'u8[8192]{0}', space=vmem, size = 0x2000, scoped, tag = 'output window, operand 0']
    %9 = vsyncpa [#allocation6], 0
    %s10 = scalar_lea.sflag [#allocation6], 1
    %11 = vsyncpa %s10, 0
    %12 = vsyncpa [#allocation9], 0
    %s13 = scalar_lea.sflag [#allocation9], 1
    %14 = vsyncpa %s13, 0
    %15 = vsyncpa [#allocation7], 0
    %s16 = scalar_lea.sflag [#allocation7], 1
    %17 = vsyncpa %s16, 0
    loop: start=0, step=1, limit=4
    $region2: #{tpu_custom_call.1} parent=1 // loop_pre_header
      _
    $region3: #{tpu_custom_call.1} parent=1 // loop_header
      %s19 = sphi 0, %s23
      %p20 = scmp.ge.s32.totalorder %s19, 4
      %s26 = sphi 0, %s38
      %s27 = sphi 0, %s34
      %s28 = sphi 0, %s26
      %s29 = sphi 0, %s27
      %s30 = sphi 0, %s28
      %s31 = sphi 0, %s29
      %s43 = sphi 0, %s45
      %s46 = sphi 0, %s43
      %s47 = sphi 0, %s46
      %s63 = sphi 0, %s47
      %s71 = sphi 0, %s73
      %s74 = sphi 0, %s71
      %s75 = sphi 0, %s74
      %s91 = sphi 0, %s75
      %s99 = sphi 0, %s101
      %s102 = sphi 0, %s99
      %s103 = sphi 0, %s102
      %s119 = sphi 0, %s103
      %s127 = sphi 0, %s129
      %s130 = sphi 0, %s127
      %s131 = sphi 0, %s130
      %s147 = sphi 0, %s131
      %s153 = sphi 0, %s155
      %s156 = sphi 0, %s153
      %s157 = sphi 0, %s156
      %s173 = sphi 0, %s157
    $region4: #{tpu_custom_call.1} parent=1 // loop_header_branch
      %22 = sbr.rel (%p20) target = $region8
    $region5: #{tpu_custom_call.1} parent=1 // loop_body
      %s24 = ssub.s32 %s19, 1
      %s25 = ssub.s32 %s19, 2
      %s32 = sadd.s32 1, %s27
      %p33 = scmp.ge.s32.totalorder %s32, 1
      %s34 = scalar_select %p33, 0, %s32
      %s35 = sadd.s32 1, %s26
      %s36 = scalar_select %p33, %s35, %s26
      %p37 = scmp.ge.s32.totalorder %s36, 2
      %s38 = scalar_select %p37, 0, %s36
      %s39 = sadd.s32 %s26, %s27
      %s40 = sadd.s32 %s38, %s34
      %s41 = ssub.s32 %s39, %s40
      %p42 = scmp.eq.s32.totalorder %s41, 0
      %s44 = sadd.s32 %s43, 1
      %s45 = scalar_select %p42, %s43, %s44
      %p48 = pneg %p42
      %p49 = scmp.eq.s32.totalorder %s19, 1
      %p50 = por %p48, %p49
      %p51 = scmp.ne.s32.totalorder %s43, %s46
      %p52 = scmp.eq.s32.totalorder %s19, 0
      %p53 = por %p51, %p52
      %p54 = scmp.ne.s32.totalorder %s43, %s46
      %p55 = scmp.eq.s32.totalorder %s24, 1
      %p56 = por %p54, %p55
      %p57 = scmp.ne.s32.totalorder %s46, %s47
      %p58 = scmp.eq.s32.totalorder %s24, 0
      %p59 = por %p57, %p58
      %p60 = scmp.ne.s32.totalorder %s46, %s47
      %p61 = scmp.eq.s32.totalorder %s25, 1
      %p62 = por %p60, %p61
      %p64 = scmp.ne.s32.totalorder %s47, %s63
      %p65 = scmp.eq.s32.totalorder %s25, 0
      %p66 = por %p64, %p65
      %s67 = sadd.s32 %s26, %s27
      %s68 = sadd.s32 %s38, %s34
      %s69 = ssub.s32 %s67, %s68
      %p70 = scmp.eq.s32.totalorder %s69, 0
      %s72 = sadd.s32 %s71, 1
      %s73 = scalar_select %p70, %s71, %s72
      %p76 = pneg %p70
      %p77 = scmp.eq.s32.totalorder %s19, 1
      %p78 = por %p76, %p77
      %p79 = scmp.ne.s32.totalorder %s71, %s74
      %p80 = scmp.eq.s32.totalorder %s19, 0
      %p81 = por %p79, %p80
      %p82 = scmp.ne.s32.totalorder %s71, %s74
      %p83 = scmp.eq.s32.totalorder %s24, 1
      %p84 = por %p82, %p83
      %p85 = scmp.ne.s32.totalorder %s74, %s75
      %p86 = scmp.eq.s32.totalorder %s24, 0
      %p87 = por %p85, %p86
      %p88 = scmp.ne.s32.totalorder %s74, %s75
      %p89 = scmp.eq.s32.totalorder %s25, 1
      %p90 = por %p88, %p89
      %p92 = scmp.ne.s32.totalorder %s75, %s91
      %p93 = scmp.eq.s32.totalorder %s25, 0
      %p94 = por %p92, %p93
      %s95 = sadd.s32 %s26, %s27
      %s96 = sadd.s32 %s38, %s34
      %s97 = ssub.s32 %s95, %s96
      %p98 = scmp.eq.s32.totalorder %s97, 0
      %s100 = sadd.s32 %s99, 1
      %s101 = scalar_select %p98, %s99, %s100
      %p104 = pneg %p98
      %p105 = scmp.eq.s32.totalorder %s19, 1
      %p106 = por %p104, %p105
      %p107 = scmp.ne.s32.totalorder %s99, %s102
      %p108 = scmp.eq.s32.totalorder %s19, 0
      %p109 = por %p107, %p108
      %p110 = scmp.ne.s32.totalorder %s99, %s102
      %p111 = scmp.eq.s32.totalorder %s24, 1
      %p112 = por %p110, %p111
      %p113 = scmp.ne.s32.totalorder %s102, %s103
      %p114 = scmp.eq.s32.totalorder %s24, 0
      %p115 = por %p113, %p114
      %p116 = scmp.ne.s32.totalorder %s102, %s103
      %p117 = scmp.eq.s32.totalorder %s25, 1
      %p118 = por %p116, %p117
      %p120 = scmp.ne.s32.totalorder %s103, %s119
      %p121 = scmp.eq.s32.totalorder %s25, 0
      %p122 = por %p120, %p121
      %s123 = sadd.s32 %s26, %s27
      %s124 = sadd.s32 %s38, %s34
      %s125 = ssub.s32 %s123, %s124
      %p126 = scmp.eq.s32.totalorder %s125, 0
      %s128 = sadd.s32 %s127, 1
      %s129 = scalar_select %p126, %s127, %s128
      %p132 = pneg %p126
      %p133 = scmp.eq.s32.totalorder %s19, 1
      %p134 = por %p132, %p133
      %p135 = scmp.ne.s32.totalorder %s127, %s130
      %p136 = scmp.eq.s32.totalorder %s19, 0
      %p137 = por %p135, %p136
      %p138 = scmp.ne.s32.totalorder %s127, %s130
      %p139 = scmp.eq.s32.totalorder %s24, 1
      %p140 = por %p138, %p139
      %p141 = scmp.ne.s32.totalorder %s130, %s131
      %p142 = scmp.eq.s32.totalorder %s24, 0
      %p143 = por %p141, %p142
      %p144 = scmp.ne.s32.totalorder %s130, %s131
      %p145 = scmp.eq.s32.totalorder %s25, 1
      %p146 = por %p144, %p145
      %p148 = scmp.ne.s32.totalorder %s131, %s147
      %p149 = scmp.eq.s32.totalorder %s25, 0
      %p150 = por %p148, %p149
      %s151 = ssub.s32 %s26, %s38
      %p152 = scmp.eq.s32.totalorder %s151, 0
      %s154 = sadd.s32 %s153, 1
      %s155 = scalar_select %p152, %s153, %s154
      %p158 = pneg %p152
      %p159 = scmp.eq.s32.totalorder %s19, 1
      %p160 = por %p158, %p159
      %p161 = scmp.ne.s32.totalorder %s153, %s156
      %p162 = scmp.eq.s32.totalorder %s19, 0
      %p163 = por %p161, %p162
      %p164 = scmp.ne.s32.totalorder %s153, %s156
      %p165 = scmp.eq.s32.totalorder %s24, 1
      %p166 = por %p164, %p165
      %p167 = scmp.ne.s32.totalorder %s156, %s157
      %p168 = scmp.eq.s32.totalorder %s24, 0
      %p169 = por %p167, %p168
      %p170 = scmp.ne.s32.totalorder %s156, %s157
      %p171 = scmp.eq.s32.totalorder %s25, 1
      %p172 = por %p170, %p171
      %p174 = scmp.ne.s32.totalorder %s157, %s173
      %p175 = scmp.eq.s32.totalorder %s25, 0
      %p176 = por %p174, %p175
      %p177 = scmp.le.s32.totalorder 1, %s19
      %p178 = scmp.lt.s32.totalorder %s19, 3
      %p179 = pnand %p177, %p178
      %p180 = pneg %p179
      // Predicated region
      $region9: #{tpu_custom_call.1} parent=5 // pred_check
        _
      $region10: #{tpu_custom_call.1} parent=5 // pred_check_branch
        %182 = sbr.rel (%p179) target = $region12
      $region11: #{tpu_custom_call.1} parent=5 // pred_region
        %s183 = ssub.s32 %s19, 1
      $region12: #{tpu_custom_call.1} parent=5 // pred_fallthru
        _
      %p184 = scmp.lt.s32.totalorder %s19, 2
      // Predicated region
      $region13: #{tpu_custom_call.1} parent=5 // pred_check
        %p185 = pneg %p184
      $region14: #{tpu_custom_call.1} parent=5 // pred_check_branch
        %187 = sbr.rel (%p185) target = $region16
      $region15: #{tpu_custom_call.1} parent=5 // pred_region
        // Predicated region
        $region17: #{tpu_custom_call.1} parent=15 // pred_check
          %p188 = pneg %p53
        $region18: #{tpu_custom_call.1} parent=15 // pred_check_branch
          %190 = sbr.rel (%p188) target = $region20
        $region19: #{tpu_custom_call.1} parent=15 // pred_region
          %s191 = sadd.s32 %s26, %s27
          %p192 = scmp.lt.s32.totalorder %s191, 1
          %s193 = scalar_select %p192, %s191, 1
          %s194 = smul.addr %s193, 8
          %s195 = scalar_lea.vmem %s0, %s194
          %s196 = sadd.s32 %s26, %s27
        $region20: #{tpu_custom_call.1} parent=15 // pred_fallthru
          _
        // Predicated region
        $region21: #{tpu_custom_call.1} parent=15 // pred_check
          %p197 = pneg %p81
        $region22: #{tpu_custom_call.1} parent=15 // pred_check_branch
          %199 = sbr.rel (%p197) target = $region24
        $region23: #{tpu_custom_call.1} parent=15 // pred_region
          %s200 = sand.u32 %s71, 1
          %s201 = scalar_lea.sflag [#allocation6], %s200
          %s202 = sand.u32 %s71, 1
          %s203 = smul.addr %s202, 8
          %s204 = scalar_lea.vmem [#allocation5], %s203
          %s205 = sadd.s32 %s26, %s27
          %207 = vsyncadd %s201, 0
          %s208 = smul.addr %s205, 8
          %s209 = scalar_lea.hbm %s1, %s208
          %s211 = sshll.u32 %s209, 4
          %s212 = int_to_ptr.hbm [resolvable:$true] %s211
          %s213 = sshll.u32 %s204, 4
          %s214 = int_to_ptr.vmem [resolvable:$true] %s213
          %216 = dma.hbm_to_vmem [thread:$0]  %s212, 128, %s214, %s201
        $region24: #{tpu_custom_call.1} parent=15 // pred_fallthru
          _
        // Predicated region
        $region25: #{tpu_custom_call.1} parent=15 // pred_check
          %p217 = pneg %p109
        $region26: #{tpu_custom_call.1} parent=15 // pred_check_branch
          %219 = sbr.rel (%p217) target = $region28
        $region27: #{tpu_custom_call.1} parent=15 // pred_region
          %s220 = sadd.s32 %s26, %s27
          %p221 = scmp.lt.s32.totalorder %s220, 1
          %s222 = scalar_select %p221, %s220, 1
          %s223 = smul.addr %s222, 8
          %s224 = scalar_lea.vmem %s2, %s223
          %s225 = sadd.s32 %s26, %s27
        $region28: #{tpu_custom_call.1} parent=15 // pred_fallthru
          _
        // Predicated region
        $region29: #{tpu_custom_call.1} parent=15 // pred_check
          %p226 = pneg %p137
        $region30: #{tpu_custom_call.1} parent=15 // pred_check_branch
          %228 = sbr.rel (%p226) target = $region32
        $region31: #{tpu_custom_call.1} parent=15 // pred_region
          %s229 = sand.u32 %s127, 1
          %s230 = scalar_lea.sflag [#allocation9], %s229
          %s231 = sand.u32 %s127, 1
          %s232 = smul.addr %s231, 8
          %s233 = scalar_lea.vmem [#allocation8], %s232
          %s234 = sadd.s32 %s26, %s27
          %236 = vsyncadd %s230, 0
          %s237 = smul.addr %s234, 8
          %s238 = scalar_lea.hbm %s3, %s237
          %s240 = sshll.u32 %s238, 4
          %s241 = int_to_ptr.hbm [resolvable:$true] %s240
          %s242 = sshll.u32 %s233, 4
          %s243 = int_to_ptr.vmem [resolvable:$true] %s242
          %245 = dma.hbm_to_vmem [thread:$0]  %s241, 128, %s243, %s230
        $region32: #{tpu_custom_call.1} parent=15 // pred_fallthru
          _
      $region16: #{tpu_custom_call.1} parent=5 // pred_fallthru
        _
      %p246 = scmp.le.s32.totalorder 1, %s19
      %p247 = scmp.lt.s32.totalorder %s19, 3
      %p248 = pnand %p246, %p247
      %p249 = pneg %p248
      // Predicated region
      $region33: #{tpu_custom_call.1} parent=5 // pred_check
        _
      $region34: #{tpu_custom_call.1} parent=5 // pred_check_branch
        %251 = sbr.rel (%p248) target = $region36
      $region35: #{tpu_custom_call.1} parent=5 // pred_region
        %s252 = ssub.s32 %s19, 1
        %s253 = sand.u32 %s74, 1
        %s254 = scalar_lea.sflag [#allocation6], %s253
        %s255 = sand.u32 %s74, 1
        %s256 = smul.addr %s255, 8
        %s257 = scalar_lea.vmem [#allocation5], %s256
        // Predicated region
        $region37: #{tpu_custom_call.1} parent=35 // pred_check
          %p258 = pneg %p87
        $region38: #{tpu_custom_call.1} parent=35 // pred_check_branch
          %260 = sbr.rel (%p258) target = $region40
        $region39: #{tpu_custom_call.1} parent=35 // pred_region
          %262 = dma.done %s254, 128
        $region40: #{tpu_custom_call.1} parent=35 // pred_fallthru
          _
        %s263 = sand.u32 %s130, 1
        %s264 = scalar_lea.sflag [#allocation9], %s263
        %s265 = sand.u32 %s130, 1
        %s266 = smul.addr %s265, 8
        %s267 = scalar_lea.vmem [#allocation8], %s266
        // Predicated region
        $region41: #{tpu_custom_call.1} parent=35 // pred_check
          %p268 = pneg %p143
        $region42: #{tpu_custom_call.1} parent=35 // pred_check_branch
          %270 = sbr.rel (%p268) target = $region44
        $region43: #{tpu_custom_call.1} parent=35 // pred_region
          %272 = dma.done %s264, 128
        $region44: #{tpu_custom_call.1} parent=35 // pred_fallthru
          _
        %s273 = sadd.s32 %s28, %s29
        %p274 = scmp.lt.s32.totalorder %s273, 1
        %s275 = scalar_select %p274, %s273, 1
        %s276 = smul.addr %s275, 8
        %s277 = scalar_lea.vmem %s0, %s276
        %p278 = pneg %p59
        %p279 = pneg %p56
        %s280 = sand.u32 %s74, 1
        %s281 = scalar_lea.sflag [#allocation6], %s280
        %s282 = sand.u32 %s74, 1
        %s283 = smul.addr %s282, 8
        %s284 = scalar_lea.vmem [#allocation5], %s283
        %p285 = pneg %p87
        %p286 = pneg %p84
        %s287 = sadd.s32 %s28, %s29
        %p288 = scmp.lt.s32.totalorder %s287, 1
        %s289 = scalar_select %p288, %s287, 1
        %s290 = smul.addr %s289, 8
        %s291 = scalar_lea.vmem %s2, %s290
        %p292 = pneg %p115
        %p293 = pneg %p112
        %s294 = sand.u32 %s130, 1
        %s295 = scalar_lea.sflag [#allocation9], %s294
        %s296 = sand.u32 %s130, 1
        %s297 = smul.addr %s296, 8
        %s298 = scalar_lea.vmem [#allocation8], %s297
        %p299 = pneg %p143
        %p300 = pneg %p140
        %p301 = pneg %p169
        %p302 = pneg %p166
        %s303 = sand.u32 %s156, 1
        %s304 = scalar_lea.sflag [#allocation7], %s303
        %s305 = sand.u32 %s156, 1
        %s306 = smul.addr %s305, 8
        %s307 = scalar_lea.vmem [#allocation10], %s306
        %s308 = sadd.s32 %s28, %s29
        %p309 = scmp.lt.s32.totalorder %s308, 1
        %s310 = scalar_select %p309, %s308, 1
        %s311 = smul.addr %s310, 8
        %s312 = scalar_lea.vmem %s0, %s311
        %s313 = sadd.s32 %s28, %s29
        %s314 = sadd.s32 %s28, %s29
        %s315 = sadd.s32 %s28, %s29
        %p316 = scmp.lt.s32.totalorder %s315, 1
        %s317 = scalar_select %p316, %s315, 1
        %s318 = smul.addr %s317, 8
        %s319 = scalar_lea.vmem %s2, %s318
        %s320 = sadd.s32 %s28, %s29
        %s321 = sadd.s32 %s28, %s29
        %p322 = scmp.eq.s32.totalorder %s29, 0
        // Predicated region
        $region45: #{tpu_custom_call.1} parent=35 // pred_check
          %p323 = pneg %p322
        $region46: #{tpu_custom_call.1} parent=35 // pred_check_branch
          %325 = sbr.rel (%p323) target = $region48
        $region47: #{tpu_custom_call.1} parent=35 // pred_region
          %vm326 = vcmask 0
          %327 = vst.msk [vmem:[#allocation2] sm:$0x1] %vm326, 0.0
          %328 = vst.msk [vmem:[#allocation3] sm:$0x1] %vm326, 0.0
          %329 = vst.msk [vmem:[#allocation4] sm:$0x1] %vm326, 0.0
        $region48: #{tpu_custom_call.1} parent=35 // pred_fallthru
          _
        %v330 = vld [vmem:[%s312] sm:$0xff]
        %v331 = vld [vmem:[%s257] sm:$0xff]
        %v332 = vld [vmem:[%s319] sm:$0xff]
        %v333 = vld [vmem:[%s267] sm:$0xff]
        %v334 = vlaneseq
        %v335 = vand.u32 %v334, 127
        %336 = vset.pattern.permute.xlu0 0
        %337 = vperm.xlu0 %336, %v332
        %v338 = vpop.permute.xlu0 %337
        %vm339 = vcmp.eq.s32.totalorder %v335, %v338
        %v340 = vld [vmem:[#allocation2] sm:$0x1]
        %vm341 = vcmask 261120
        %v342 = vsel %vm341, %v330, -inf
        %343 = vmax.xlane.f32.xlu0 %v342
        %v344 = vpop.xlane.xlu0 %343
        %v345 = vsub.f32 %v330, %v344
        %v346 = vmul.f32 %v345, 1.442695
        %v347 = vpow.pop %v346
        %v348 = vsel %vm341, %v347, 0.0
        %349 = vadd.xlane.f32.xlu0 %v348
        %v350 = vpop.xlane.xlu0 %349
        %v351 = vlog2.pop %v350
        %v352 = vmul.f32 %v351, 0.6931472
        %v353 = vadd.f32 %v352, %v344
        %v354 = vsel %vm339, %v330, 0.0
        %v355 = vsel %vm341, %v354, 0.0
        %356 = vadd.xlane.f32.xlu0 %v355
        %v357 = vpop.xlane.xlu0 %356
        %v358 = vsub.f32 %v353, %v357
        %v359 = vrot.slane %v358, 4
        %v360 = vadd.f32 %v358, %v359
        %v361 = vrot.slane %v360, 2
        %v362 = vadd.f32 %v360, %v361
        %v363 = vrot.slane %v362, 1
        %v364 = vadd.f32 %v362, %v363
        %v365 = vadd.f32 %v340, %v364
        %vm366 = vcmask 0
        %367 = vst.msk [vmem:[#allocation2] sm:$0x1] %vm366, %v365
        %v368 = vld [vmem:[#allocation3] sm:$0x1]
        %v369 = vsel %vm341, %v331, -inf
        %370 = vmax.xlane.f32.xlu0 %v369
        %v371 = vpop.xlane.xlu0 %370
        %v372 = vsub.f32 %v331, %v371
        %v373 = vmul.f32 %v372, 1.442695
        %v374 = vpow.pop %v373
        %v375 = vsel %vm341, %v374, 0.0
        %376 = vadd.xlane.f32.xlu0 %v375
        %v377 = vpop.xlane.xlu0 %376
        %v378 = vlog2.pop %v377
        %v379 = vmul.f32 %v378, 0.6931472
        %v380 = vadd.f32 %v379, %v371
        %v381 = vsel %vm339, %v331, 0.0
        %v382 = vsel %vm341, %v381, 0.0
        %383 = vadd.xlane.f32.xlu0 %v382
        %v384 = vpop.xlane.xlu0 %383
        %v385 = vsub.f32 %v380, %v384
        %v386 = vrot.slane %v385, 4
        %v387 = vadd.f32 %v385, %v386
        %v388 = vrot.slane %v387, 2
        %v389 = vadd.f32 %v387, %v388
        %v390 = vrot.slane %v389, 1
        %v391 = vadd.f32 %v389, %v390
        %v392 = vadd.f32 %v368, %v391
        %393 = vst.msk [vmem:[#allocation3] sm:$0x1] %vm366, %v392
        %v394 = vsub.f32 %v333, 0.25
        %v395 = vld [vmem:[#allocation4] sm:$0x1]
        %v396 = vmul.f32 %v394, %v394
        %397 = vadd.xlane.f32.xlu0 %v396
        %v398 = vpop.xlane.xlu0 %397
        %v399 = vrot.slane %v398, 4
        %v400 = vadd.f32 %v398, %v399
        %v401 = vrot.slane %v400, 2
        %v402 = vadd.f32 %v400, %v401
        %v403 = vrot.slane %v402, 1
        %v404 = vadd.f32 %v402, %v403
        %v405 = vadd.f32 %v395, %v404
        %406 = vst.msk [vmem:[#allocation4] sm:$0x1] %vm366, %v405
        // Predicated region
        $region49: #{tpu_custom_call.1} parent=35 // pred_check
          %p407 = pneg %p322
        $region50: #{tpu_custom_call.1} parent=35 // pred_check_branch
          %409 = sbr.rel (%p407) target = $region52
        $region51: #{tpu_custom_call.1} parent=35 // pred_region
          %vm410 = vcmp.eq.s32.totalorder %v335, 0
          %v411 = vld [vmem:[#allocation2] sm:$0x1]
          %v413 = vperm.slane %v411, 0
          %414 = vset.pattern.permute.xlu0 0
          %415 = vperm.xlu0 %414, %v413
          %v416 = vpop.permute.xlu0 %415
          %v418 = vsel %vm410, %v416, 0.0
          %vm419 = vcmp.eq.s32.totalorder %v335, 1
          %v420 = vld [vmem:[#allocation3] sm:$0x1]
          %v422 = vperm.slane %v420, 0
          %423 = vset.pattern.permute.xlu0 0
          %424 = vperm.xlu0 %423, %v422
          %v425 = vpop.permute.xlu0 %424
          %v427 = vsel %vm419, %v425, 0.0
          %v428 = vadd.f32 %v418, %v427
          %vm429 = vcmp.eq.s32.totalorder %v335, 2
          %v430 = vld [vmem:[#allocation4] sm:$0x1]
          %v432 = vperm.slane %v430, 0
          %433 = vset.pattern.permute.xlu0 0
          %434 = vperm.xlu0 %433, %v432
          %v435 = vpop.permute.xlu0 %434
          %v437 = vsel %vm429, %v435, 0.0
          %v438 = vadd.f32 %v428, %v437
          %439 = vst [vmem:[%s307] sm:$0xff] %v438
        $region52: #{tpu_custom_call.1} parent=35 // pred_fallthru
          _
        %s440 = sand.u32 %s156, 1
        %s441 = scalar_lea.sflag [#allocation7], %s440
        %s442 = sand.u32 %s156, 1
        %s443 = smul.addr %s442, 8
        %s444 = scalar_lea.vmem [#allocation10], %s443
        // Predicated region
        $region53: #{tpu_custom_call.1} parent=35 // pred_check
          %p445 = pneg %p166
        $region54: #{tpu_custom_call.1} parent=35 // pred_check_branch
          %447 = sbr.rel (%p445) target = $region56
        $region55: #{tpu_custom_call.1} parent=35 // pred_region
          %449 = vsyncadd %s441, 0
          %s450 = smul.addr %s28, 8
          %s451 = scalar_lea.hbm %s4, %s450
          %s453 = sshll.u32 %s444, 4
          %s454 = int_to_ptr.vmem [resolvable:$true] %s453
          %s455 = sshll.u32 %s451, 4
          %s456 = int_to_ptr.hbm [resolvable:$true] %s455
          %458 = dma.vmem_to_hbm [thread:$0]  %s454, 128, %s456, %s441
        $region56: #{tpu_custom_call.1} parent=35 // pred_fallthru
          _
      $region36: #{tpu_custom_call.1} parent=5 // pred_fallthru
        _
      %p459 = scmp.le.s32.totalorder 2, %s19
      // Predicated region
      $region57: #{tpu_custom_call.1} parent=5 // pred_check
        %p460 = pneg %p459
      $region58: #{tpu_custom_call.1} parent=5 // pred_check_branch
        %462 = sbr.rel (%p460) target = $region60
      $region59: #{tpu_custom_call.1} parent=5 // pred_region
        %s463 = ssub.s32 %s19, 2
        // Predicated region
        $region61: #{tpu_custom_call.1} parent=59 // pred_check
          %p464 = pneg %p172
        $region62: #{tpu_custom_call.1} parent=59 // pred_check_branch
          %466 = sbr.rel (%p464) target = $region64
        $region63: #{tpu_custom_call.1} parent=59 // pred_region
          %s467 = sand.u32 %s157, 1
          %s468 = scalar_lea.sflag [#allocation7], %s467
          %s469 = sand.u32 %s157, 1
          %s470 = smul.addr %s469, 8
          %s471 = scalar_lea.vmem [#allocation10], %s470
          %473 = dma.done %s468, 128
        $region64: #{tpu_custom_call.1} parent=59 // pred_fallthru
          _
      $region60: #{tpu_custom_call.1} parent=5 // pred_fallthru
        _
    $region6: #{tpu_custom_call.1} parent=1 // loop_footer
      %s23 = sadd.s32 1, %s19
    $region7: #{tpu_custom_call.1} parent=1 // loop_footer_branch
      %18 = sbr.rel target = $region3
    $region8: #{tpu_custom_call.1} parent=1 // loop_exit
      _
    %474 = vsyncpa [#allocation6], 1
    %s475 = scalar_lea.sflag [#allocation6], 1
    %476 = vsyncpa %s475, 1
    %477 = vsyncpa [#allocation9], 1
    %s478 = scalar_lea.sflag [#allocation9], 1
    %479 = vsyncpa %s478, 1
    %480 = vsyncpa [#allocation7], 1
    %s481 = scalar_lea.sflag [#allocation7], 1
    %482 = vsyncpa %s481, 1

</llo_original>
